<compile_context>
chip_gen: v7x
topology: tpu7x:2x2x1
jax: 0.10.0
libtpu: 0.0.40
codegen_flags: <defaults>
</compile_context>

<pallas_src>
from functools import partial

import numpy as np
import jax
import jax.numpy as jnp
from jax.experimental import pallas as pl
from jax.experimental.pallas import tpu as pltpu


# ----------------------------------------------------------------------------
# Parameter construction (mirrors transition('legs') + bilinear discretization
# in HiPPOScale.__init__; plain numpy, deterministic).
# ----------------------------------------------------------------------------
def legs_transition(N):
    q = np.arange(N, dtype=np.float64)
    col, row = np.meshgrid(q, q)
    r = 2 * q + 1
    M = -(np.where(row >= col, r, 0) - np.diag(q))
    T = np.sqrt(np.diag(2 * q + 1))
    A = T @ M @ np.linalg.inv(T)
    B = np.diag(T)[:, None]
    return A, B.copy()


def build_hippo_scale_params(N, max_length):
    """float32 A_stacked (max_length, N, N) / B_stacked (max_length, N) buffers."""
    A, B = legs_transition(N)
    B = B.squeeze(-1)
    A_stacked = np.empty((max_length, N, N), dtype=np.float64)
    B_stacked = np.empty((max_length, N), dtype=np.float64)
    eye = np.eye(N)
    for t in range(1, max_length + 1):
        At, Bt = A / t, B / t
        lhs = eye - At / 2  # lower triangular for 'legs'; solve == triangular solve
        A_stacked[t - 1] = np.linalg.solve(lhs, eye + At / 2)
        B_stacked[t - 1] = np.linalg.solve(lhs, Bt)
    return A_stacked.astype(np.float32), B_stacked.astype(np.float32)


def _round_up(x, m):
    return ((x + m - 1) // m) * m


# ----------------------------------------------------------------------------
# One-time parameter packing: blocked-scan transition tensors, lane-dense.
# ----------------------------------------------------------------------------
def pack_hippo_scale_blocks(A_stacked, B_stacked, time_block, param_dtype=jnp.float32):
    """Host-side, one-time prep (like registering buffers in __init__).

    Returns:
      M_packed : (nt, N, TL*N)   M_packed[t, m, s*N + n] = (A_{t0+s}...A_{t0})[n, m]
      P_packed : (nt, TL, TL*N)  P_packed[t, j, s*N + n] = (A_{t0+s}...A_{t0+j+1} B_{t0+j})[n]
    Timesteps beyond max_length (padding up to a multiple of TL) use identity
    transitions / zero B, so padded steps are exact no-ops for the carried state.
    """
    A_stacked = np.asarray(A_stacked, np.float64)
    B_stacked = np.asarray(B_stacked, np.float64)
    Lmax, N, _ = A_stacked.shape
    TL = int(time_block)
    assert N % 8 == 0, "N must be a multiple of 8 for the TPU sublane tiling"
    assert (TL * N) % 128 == 0, "time_block * N must be a multiple of 128 lanes"

    Lp = _round_up(Lmax, TL)
    if Lp > Lmax:
        pad = Lp - Lmax
        A_stacked = np.concatenate(
            [A_stacked, np.broadcast_to(np.eye(N), (pad, N, N))], axis=0)
        B_stacked = np.concatenate([B_stacked, np.zeros((pad, N))], axis=0)

    nt = Lp // TL
    M_packed = np.empty((nt, N, TL * N), np.float64)
    P_packed = np.empty((nt, TL, TL * N), np.float64)
    for t in range(nt):
        A_blk = A_stacked[t * TL:(t + 1) * TL]
        B_blk = B_stacked[t * TL:(t + 1) * TL]
        M = np.eye(N)                       # cumulative product A_s ... A_0
        Prow = np.zeros((TL, N))            # Prow[j] = P_{s,j}
        M_all = np.empty((TL, N, N))
        P_all = np.empty((TL, TL, N))
        for s in range(TL):
            M = A_blk[s] @ M
            Prow = Prow @ A_blk[s].T        # propagate earlier inputs by A_s
            Prow[s] = B_blk[s]              # inject current input's B
            M_all[s] = M
            P_all[s] = Prow
        # lane-dense packing: [..., s*N + n]
        M_packed[t] = M_all.transpose(2, 0, 1).reshape(N, TL * N)
        P_packed[t] = P_all.transpose(1, 0, 2).reshape(TL, TL * N)

    return (jnp.asarray(M_packed, param_dtype), jnp.asarray(P_packed, param_dtype))


# ----------------------------------------------------------------------------
# Pallas kernel: one TL-timestep block x one batch chunk per grid step.
# ----------------------------------------------------------------------------
def hippo_scale_block_kernel(m_ref, p_ref, u_ref, o_ref, c_ref, *,
                             state_n, time_block):
    # m_ref: (1, N, TL*N)     state-propagation block (f32 or bf16)
    # p_ref: (1, TL, TL*N)    input-propagation block (f32 or bf16)
    # u_ref: (1, Bc, TL)      raw inputs f for this (time block, batch chunk)
    # o_ref: (Bc, TL*N)       lane-dense output slab (f32)
    # c_ref: VMEM (nb, Bc, N) per-batch-chunk carried state (f32)
    t = pl.program_id(0)          # time block index (sequential, outer)
    b = pl.program_id(1)          # batch chunk index (inner)

    @pl.when(t == 0)
    def _():
        c_ref[b] = jnp.zeros(c_ref.shape[1:], c_ref.dtype)

    c_in = c_ref[b]               # (Bc, N)
    f = u_ref[0]                  # (Bc, TL)
    m = m_ref[0]                  # (N, TL*N)
    p = p_ref[0]                  # (TL, TL*N)

    # out[b, s*N + n] = sum_m c_in[b,m]*M_s[n,m] + sum_j f[b,j]*P_{s,j}[n]
    out = (jnp.dot(c_in, m, preferred_element_type=jnp.float32)
           + jnp.dot(f, p, preferred_element_type=jnp.float32))     # (Bc, TL*N)

    o_ref[...] = out.astype(o_ref.dtype)
    # carried state = state after the last timestep of this block
    c_ref[b] = out[:, (time_block - 1) * state_n:]


def hippo_scale_forward(M_packed, P_packed, inputs, *, batch_block=None):
    """inputs: (L, ...) -> (L, ..., N) float32 (HiPPOScale.forward semantics)."""
    inputs = jnp.asarray(inputs, jnp.float32)
    L = inputs.shape[0]
    batch_shape = inputs.shape[1:]
    Bflat = int(np.prod(batch_shape)) if batch_shape else 1

    nt_max, N, TLN = M_packed.shape
    TL = TLN // N
    assert P_packed.shape == (nt_max, TL, TLN), P_packed.shape

    nt = (L + TL - 1) // TL
    assert nt <= nt_max, "sequence longer than the packed max_length"
    Lp = nt * TL

    # Batch chunking: fill the MXU M dim (default cap 128; raise to 256 on
    # v6e/v7x if Bflat allows; keep a multiple of 8).
    if batch_block is None:
        Bc = min(_round_up(max(Bflat, 8), 8), 128)
    else:
        Bc = max(8, _round_up(int(batch_block), 8))
    Bp = _round_up(max(Bflat, Bc), Bc)
    nb = Bp // Bc

    # inputs (L, ...) -> lane-dense (nt, Bp, TL), zero-padded.
    x = inputs.reshape(L, Bflat)
    x = jnp.pad(x, ((0, Lp - L), (0, Bp - Bflat)))
    u = x.T.reshape(Bp, nt, TL).transpose(1, 0, 2)          # (nt, Bp, TL)

    grid_spec = pltpu.PrefetchScalarGridSpec(
        num_scalar_prefetch=0,
        grid=(nt, nb),                                      # time outer, batch inner
        in_specs=[
            # M/P depend only on t -> each block DMA'd from HBM exactly once.
            pl.BlockSpec((1, N, TLN), lambda t, b: (t, 0, 0)),
            pl.BlockSpec((1, TL, TLN), lambda t, b: (t, 0, 0)),
            pl.BlockSpec((1, Bc, TL), lambda t, b: (t, b, 0)),
        ],
        out_specs=pl.BlockSpec((Bc, TLN), lambda t, b: (b, t)),   # lane-dense slab
        scratch_shapes=[pltpu.VMEM((nb, Bc, N), jnp.float32)],    # per-chunk state
    )

    out = pl.pallas_call(
        partial(hippo_scale_block_kernel, state_n=N, time_block=TL),
        out_shape=jax.ShapeDtypeStruct((Bp, nt * TLN), jnp.float32),
        grid_spec=grid_spec,
        compiler_params=pltpu.CompilerParams(
            dimension_semantics=("arbitrary", "arbitrary")),
    )(M_packed[:nt], P_packed[:nt], u)

    # (Bp, Lp*N) -> (L, ..., N): one small XLA transpose back to time-major.
    out = out.reshape(Bp, Lp, N)[:Bflat, :L]
    out = jnp.transpose(out, (1, 0, 2))
    return out.reshape((L,) + tuple(batch_shape) + (N,))


# ----------------------------------------------------------------------------
# Exact (float64, host-side numpy) step-by-step reference for correctness.
# ----------------------------------------------------------------------------
def hippo_scale_ref(A_stacked, B_stacked, inputs):
    x = np.asarray(inputs, np.float64)
    L = x.shape[0]
    batch_shape = x.shape[1:]
    Bflat = int(np.prod(batch_shape)) if batch_shape else 1
    N = A_stacked.shape[-1]
    A = np.asarray(A_stacked, np.float64)[:L]
    B = np.asarray(B_stacked, np.float64)[:L]
    xf = x.reshape(L, Bflat)
    c = np.zeros((Bflat, N))
    out = np.empty((L, Bflat, N))
    for t in range(L):
        c = c @ A[t].T + xf[t][:, None] * B[t][None, :]
        out[t] = c
    return out.reshape((L,) + tuple(batch_shape) + (N,))


if __name__ == "__main__":
    N = 32
    max_length = 128
    L = 72                        # not a multiple of time_block -> padding path
    batch_shape = (3, 5)          # flattened batch = 15 -> batch padding too

    A_stacked, B_stacked = build_hippo_scale_params(N, max_length)

    key = jax.random.PRNGKey(0)
    inputs = jax.random.normal(key, (L,) + batch_shape, dtype=jnp.float32)

    ref = hippo_scale_ref(A_stacked, B_stacked, inputs)
    scale = max(1.0, float(np.max(np.abs(ref))))

    # Config 1: TL=32, Bc=8 -> 3 sequential time blocks x 2 batch chunks;
    # exercises carried state across blocks, time padding and batch padding.
    Mp32, Pp32 = pack_hippo_scale_blocks(A_stacked, B_stacked, time_block=32)
    out32 = jax.block_until_ready(
        hippo_scale_forward(Mp32, Pp32, inputs, batch_block=8))
    assert out32.shape == (L,) + batch_shape + (N,), out32.shape
    err32 = float(np.max(np.abs(np.asarray(out32, np.float64) - ref)))
    assert err32 < 3e-2 * scale, f"float32 (TL=32) max abs error {err32} (scale {scale})"

    # Config 2: default blocking (TL=64, auto batch_block).
    Mp64, Pp64 = pack_hippo_scale_blocks(A_stacked, B_stacked, time_block=64)
    out64 = jax.block_until_ready(hippo_scale_forward(Mp64, Pp64, inputs))
    err64 = float(np.max(np.abs(np.asarray(out64, np.float64) - ref)))
    assert err64 < 3e-2 * scale, f"float32 (TL=64) max abs error {err64} (scale {scale})"

    # Config 3: bf16 transition tensors (halves the dominant HBM read traffic;
    # carried state, inputs and accumulation stay f32).  Looser tolerance since
    # bf16 parameter rounding compounds through the recurrence.
    Mpb, Ppb = pack_hippo_scale_blocks(A_stacked, B_stacked, time_block=64,
                                       param_dtype=jnp.bfloat16)
    outb = jax.block_until_ready(hippo_scale_forward(Mpb, Ppb, inputs))
    errb = float(np.max(np.abs(np.asarray(outb, np.float64) - ref)))
    assert errb < 8e-2 * scale, f"bfloat16 max abs error {errb} (scale {scale})"

    print("KERNEL_OK")
</pallas_src>

<mosaic_0001>
module attributes {stable_mosaic.version = 11 : i64} {
  func.func @hippo_scale_block_kernel(%arg0: i32, %arg1: i32, %arg2: memref<1x32x1024xf32, #tpu.memory_space<vmem>>, %arg3: memref<1x32x1024xf32, #tpu.memory_space<vmem>>, %arg4: memref<1x8x32xf32, #tpu.memory_space<vmem>>, %arg5: memref<8x1024xf32, #tpu.memory_space<vmem>>, %arg6: memref<2x8x32xf32, #tpu.memory_space<vmem>>) attributes {dimension_semantics = [#tpu.dimension_semantics<arbitrary>, #tpu.dimension_semantics<arbitrary>], iteration_bounds = array<i64: 3, 2>, scalar_prefetch = 0 : i64, scratch_operands = 1 : i64, tpu.core_type = #tpu.core_type<tc>, window_params = [{transform_indices = @transform_0, window_bounds = array<i64: 1, 32, 1024>}, {transform_indices = @transform_1, window_bounds = array<i64: 1, 32, 1024>}, {transform_indices = @transform_2, window_bounds = array<i64: 1, 8, 32>}, {transform_indices = @transform_3, window_bounds = array<i64: 8, 1024>}]} {
    %c0_i32 = arith.constant 0 : i32
    %0 = arith.cmpi eq, %arg0, %c0_i32 : i32
    %1 = arith.extui %0 : i1 to i32
    %c0_i32_0 = arith.constant 0 : i32
    %2 = arith.cmpi ne, %1, %c0_i32_0 : i32
    scf.if %2 {
      %cst_16 = arith.constant 0.000000e+00 : f32
      %21 = vector.broadcast %cst_16 : f32 to vector<8x32xf32>
      %22 = arith.index_cast %arg1 : i32 to index
      %c0_17 = arith.constant 0 : index
      %c0_18 = arith.constant 0 : index
      %23 = vector.load %arg6[%22, %c0_17, %c0_18] : memref<2x8x32xf32, #tpu.memory_space<vmem>>, vector<1x8x32xf32>
      %24 = vector.shape_cast %23 : vector<1x8x32xf32> to vector<8x32xf32>
      %25 = vector.shape_cast %21 : vector<8x32xf32> to vector<1x8x32xf32>
      tpu.vector_store %arg6[%22, %c0_17, %c0_18], %25 {strides = array<i32>} : memref<2x8x32xf32, #tpu.memory_space<vmem>>, vector<1x8x32xf32>,
    } else {
    }
    %3 = arith.index_cast %arg1 : i32 to index
    %c0 = arith.constant 0 : index
    %c0_1 = arith.constant 0 : index
    %4 = vector.load %arg6[%3, %c0, %c0_1] : memref<2x8x32xf32, #tpu.memory_space<vmem>>, vector<1x8x32xf32>
    %5 = vector.shape_cast %4 : vector<1x8x32xf32> to vector<8x32xf32>
    %c0_2 = arith.constant 0 : index
    %c0_3 = arith.constant 0 : index
    %c0_4 = arith.constant 0 : index
    %6 = vector.load %arg4[%c0_2, %c0_3, %c0_4] : memref<1x8x32xf32, #tpu.memory_space<vmem>>, vector<1x8x32xf32>
    %7 = vector.shape_cast %6 : vector<1x8x32xf32> to vector<8x32xf32>
    %c0_5 = arith.constant 0 : index
    %c0_6 = arith.constant 0 : index
    %c0_7 = arith.constant 0 : index
    %8 = vector.load %arg2[%c0_5, %c0_6, %c0_7] : memref<1x32x1024xf32, #tpu.memory_space<vmem>>, vector<1x32x1024xf32>
    %9 = vector.shape_cast %8 : vector<1x32x1024xf32> to vector<32x1024xf32>
    %c0_8 = arith.constant 0 : index
    %c0_9 = arith.constant 0 : index
    %c0_10 = arith.constant 0 : index
    %10 = vector.load %arg3[%c0_8, %c0_9, %c0_10] : memref<1x32x1024xf32, #tpu.memory_space<vmem>>, vector<1x32x1024xf32>
    %11 = vector.shape_cast %10 : vector<1x32x1024xf32> to vector<32x1024xf32>
    %cst = arith.constant dense<0.000000e+00> : vector<8x1024xf32>
    %12 = tpu.matmul %5, %9, %cst {dimension_numbers = #tpu.dot_dimension_numbers<[1], [0], [0], [1], [0, 0, 1, 1], [], []>} : vector<8x32xf32>, vector<32x1024xf32>, vector<8x1024xf32> -> vector<8x1024xf32>
    %cst_11 = arith.constant dense<0.000000e+00> : vector<8x1024xf32>
    %13 = tpu.matmul %7, %11, %cst_11 {dimension_numbers = #tpu.dot_dimension_numbers<[1], [0], [0], [1], [0, 0, 1, 1], [], []>} : vector<8x32xf32>, vector<32x1024xf32>, vector<8x1024xf32> -> vector<8x1024xf32>
    %14 = arith.addf %12, %13 : vector<8x1024xf32>
    %c0_12 = arith.constant 0 : index
    %c0_13 = arith.constant 0 : index
    %15 = vector.load %arg5[%c0_12, %c0_13] : memref<8x1024xf32, #tpu.memory_space<vmem>>, vector<8x1024xf32>
    tpu.vector_store %arg5[%c0_12, %c0_13], %14 {strides = array<i32>} : memref<8x1024xf32, #tpu.memory_space<vmem>>, vector<8x1024xf32>,
    %16 = vector.extract_strided_slice %14 {offsets = [0, 992], sizes = [8, 32], strides = [1, 1]} : vector<8x1024xf32> to vector<8x32xf32>
    %17 = arith.index_cast %arg1 : i32 to index
    %c0_14 = arith.constant 0 : index
    %c0_15 = arith.constant 0 : index
    %18 = vector.load %arg6[%17, %c0_14, %c0_15] : memref<2x8x32xf32, #tpu.memory_space<vmem>>, vector<1x8x32xf32>
    %19 = vector.shape_cast %18 : vector<1x8x32xf32> to vector<8x32xf32>
    %20 = vector.shape_cast %16 : vector<8x32xf32> to vector<1x8x32xf32>
    tpu.vector_store %arg6[%17, %c0_14, %c0_15], %20 {strides = array<i32>} : memref<2x8x32xf32, #tpu.memory_space<vmem>>, vector<1x8x32xf32>,
    return
  }
  func.func @transform_0(%arg0: i32, %arg1: i32) -> (i32, i32, i32) {
    %c0_i32 = arith.constant 0 : i32
    %c0_i32_0 = arith.constant 0 : i32
    %c0_i32_1 = arith.constant 0 : i32
    return %arg0, %c0_i32, %c0_i32_0 : i32, i32, i32
  }
  func.func @transform_1(%arg0: i32, %arg1: i32) -> (i32, i32, i32) {
    %c0_i32 = arith.constant 0 : i32
    %c0_i32_0 = arith.constant 0 : i32
    %c0_i32_1 = arith.constant 0 : i32
    return %arg0, %c0_i32, %c0_i32_0 : i32, i32, i32
  }
  func.func @transform_2(%arg0: i32, %arg1: i32) -> (i32, i32, i32) {
    %c0_i32 = arith.constant 0 : i32
    %c0_i32_0 = arith.constant 0 : i32
    return %arg0, %arg1, %c0_i32 : i32, i32, i32
  }
  func.func @transform_3(%arg0: i32, %arg1: i32) -> (i32, i32) {
    %c0_i32 = arith.constant 0 : i32
    return %arg1, %arg0 : i32, i32
  }
}

</mosaic_0001>

<llo_original>
// kernel: tpu_custom_call.1
$region0: #{tpu_custom_call.1}
  #allocation0 [shape = 'u32[]', space=smem, size = 0x4, offset = 0x4, fixed_abs, tag = 'smem constant byte address 0x4 - core index']
  #allocation1 [shape = 'u32[144,128]{1,0:T(1,128)}', space=vmem, size = 0x12000, scoped, tag = 'internal scratch']
  #allocation2 [shape = 'f32[2,8,32]{2,1,0:T(8,128)}', space=vmem, size = 0x2000, scoped, tag = 'scratch operand']
  %s0 = inlined_call_operand.hbm [shape: f32[3,32,1024], index: 0, kind: input, shape index: {}]
  %s1 = inlined_call_operand.hbm [shape: f32[3,32,1024], index: 1, kind: input, shape index: {}]
  %s2 = inlined_call_operand.hbm [shape: f32[3,16,32], index: 2, kind: input, shape index: {}]
  %s3 = inlined_call_operand.hbm [shape: f32[16,3072], index: 3, kind: output, shape index: {}]
  %s4 = sld [smem:[#allocation0]]
  $region61: #{tpu_custom_call.1} parent=0
    _
  %s6 = ssub.s32 1, %s4
  %s7 = scalar_select 0, %s6, %s4
  $region1: #{tpu_custom_call.1} parent=0
    #allocation3 [shape = 'u8[262144]{0}', space=vmem, size = 0x40000, scoped, tag = 'input window, operand 0']
    #allocation4 [shape = 's32[2]{0}', space=sflag, size = 0x8, scoped, tag = 'scoped memory for tpu_custom_call.1']
    #allocation5 [shape = 's32[2]{0}', space=sflag, size = 0x8, scoped, tag = 'scoped memory for tpu_custom_call.1']
    #allocation6 [shape = 'u8[262144]{0}', space=vmem, size = 0x40000, scoped, tag = 'input window, operand 1']
    #allocation7 [shape = 's32[2]{0}', space=sflag, size = 0x8, scoped, tag = 'scoped memory for tpu_custom_call.1']
    #allocation8 [shape = 'u8[8192]{0}', space=vmem, size = 0x2000, scoped, tag = 'input window, operand 2']
    #allocation9 [shape = 'u8[65536]{0}', space=vmem, size = 0x10000, scoped, tag = 'output window, operand 0']
    %8 = vsyncpa [#allocation4], 0
    %s9 = scalar_lea.sflag [#allocation4], 1
    %10 = vsyncpa %s9, 0
    %11 = vsyncpa [#allocation7], 0
    %s12 = scalar_lea.sflag [#allocation7], 1
    %13 = vsyncpa %s12, 0
    %14 = vsyncpa [#allocation5], 0
    %s15 = scalar_lea.sflag [#allocation5], 1
    %16 = vsyncpa %s15, 0
    loop: start=0, step=1, limit=8
    $region2: #{tpu_custom_call.1} parent=1 // loop_pre_header
      _
    $region3: #{tpu_custom_call.1} parent=1 // loop_header
      %s18 = sphi 0, %s22
      %p19 = scmp.ge.s32.totalorder %s18, 8
      %s25 = sphi 0, %s37
      %s26 = sphi 0, %s33
      %s27 = sphi 0, %s25
      %s28 = sphi 0, %s26
      %s29 = sphi 0, %s27
      %s30 = sphi 0, %s28
      %s40 = sphi 0, %s42
      %s43 = sphi 0, %s40
      %s44 = sphi 0, %s43
      %s60 = sphi 0, %s44
      %s66 = sphi 0, %s68
      %s69 = sphi 0, %s66
      %s70 = sphi 0, %s69
      %s86 = sphi 0, %s70
      %s94 = sphi 0, %s96
      %s97 = sphi 0, %s94
      %s98 = sphi 0, %s97
      %s114 = sphi 0, %s98
      %s122 = sphi 0, %s124
      %s125 = sphi 0, %s122
      %s126 = sphi 0, %s125
      %s142 = sphi 0, %s126
    $region4: #{tpu_custom_call.1} parent=1 // loop_header_branch
      %21 = sbr.rel (%p19) target = $region8
    $region5: #{tpu_custom_call.1} parent=1 // loop_body
      %s23 = ssub.s32 %s18, 1
      %s24 = ssub.s32 %s18, 2
      %s31 = sadd.s32 1, %s26
      %p32 = scmp.ge.s32.totalorder %s31, 2
      %s33 = scalar_select %p32, 0, %s31
      %s34 = sadd.s32 1, %s25
      %s35 = scalar_select %p32, %s34, %s25
      %p36 = scmp.ge.s32.totalorder %s35, 3
      %s37 = scalar_select %p36, 0, %s35
      %s38 = ssub.s32 %s25, %s37
      %p39 = scmp.eq.s32.totalorder %s38, 0
      %s41 = sadd.s32 %s40, 1
      %s42 = scalar_select %p39, %s40, %s41
      %p45 = pneg %p39
      %p46 = scmp.eq.s32.totalorder %s18, 5
      %p47 = por %p45, %p46
      %p48 = scmp.ne.s32.totalorder %s40, %s43
      %p49 = scmp.eq.s32.totalorder %s18, 0
      %p50 = por %p48, %p49
      %p51 = scmp.ne.s32.totalorder %s40, %s43
      %p52 = scmp.eq.s32.totalorder %s23, 5
      %p53 = por %p51, %p52
      %p54 = scmp.ne.s32.totalorder %s43, %s44
      %p55 = scmp.eq.s32.totalorder %s23, 0
      %p56 = por %p54, %p55
      %p57 = scmp.ne.s32.totalorder %s43, %s44
      %p58 = scmp.eq.s32.totalorder %s24, 5
      %p59 = por %p57, %p58
      %p61 = scmp.ne.s32.totalorder %s44, %s60
      %p62 = scmp.eq.s32.totalorder %s24, 0
      %p63 = por %p61, %p62
      %s64 = ssub.s32 %s25, %s37
      %p65 = scmp.eq.s32.totalorder %s64, 0
      %s67 = sadd.s32 %s66, 1
      %s68 = scalar_select %p65, %s66, %s67
      %p71 = pneg %p65
      %p72 = scmp.eq.s32.totalorder %s18, 5
      %p73 = por %p71, %p72
      %p74 = scmp.ne.s32.totalorder %s66, %s69
      %p75 = scmp.eq.s32.totalorder %s18, 0
      %p76 = por %p74, %p75
      %p77 = scmp.ne.s32.totalorder %s66, %s69
      %p78 = scmp.eq.s32.totalorder %s23, 5
      %p79 = por %p77, %p78
      %p80 = scmp.ne.s32.totalorder %s69, %s70
      %p81 = scmp.eq.s32.totalorder %s23, 0
      %p82 = por %p80, %p81
      %p83 = scmp.ne.s32.totalorder %s69, %s70
      %p84 = scmp.eq.s32.totalorder %s24, 5
      %p85 = por %p83, %p84
      %p87 = scmp.ne.s32.totalorder %s70, %s86
      %p88 = scmp.eq.s32.totalorder %s24, 0
      %p89 = por %p87, %p88
      %s90 = ssub.s32 %s25, %s37
      %s91 = ssub.s32 %s26, %s33
      %s92 = sor.u32 %s90, %s91
      %p93 = scmp.eq.s32.totalorder %s92, 0
      %s95 = sadd.s32 %s94, 1
      %s96 = scalar_select %p93, %s94, %s95
      %p99 = pneg %p93
      %p100 = scmp.eq.s32.totalorder %s18, 5
      %p101 = por %p99, %p100
      %p102 = scmp.ne.s32.totalorder %s94, %s97
      %p103 = scmp.eq.s32.totalorder %s18, 0
      %p104 = por %p102, %p103
      %p105 = scmp.ne.s32.totalorder %s94, %s97
      %p106 = scmp.eq.s32.totalorder %s23, 5
      %p107 = por %p105, %p106
      %p108 = scmp.ne.s32.totalorder %s97, %s98
      %p109 = scmp.eq.s32.totalorder %s23, 0
      %p110 = por %p108, %p109
      %p111 = scmp.ne.s32.totalorder %s97, %s98
      %p112 = scmp.eq.s32.totalorder %s24, 5
      %p113 = por %p111, %p112
      %p115 = scmp.ne.s32.totalorder %s98, %s114
      %p116 = scmp.eq.s32.totalorder %s24, 0
      %p117 = por %p115, %p116
      %s118 = ssub.s32 %s26, %s33
      %s119 = ssub.s32 %s25, %s37
      %s120 = sor.u32 %s118, %s119
      %p121 = scmp.eq.s32.totalorder %s120, 0
      %s123 = sadd.s32 %s122, 1
      %s124 = scalar_select %p121, %s122, %s123
      %p127 = pneg %p121
      %p128 = scmp.eq.s32.totalorder %s18, 5
      %p129 = por %p127, %p128
      %p130 = scmp.ne.s32.totalorder %s122, %s125
      %p131 = scmp.eq.s32.totalorder %s18, 0
      %p132 = por %p130, %p131
      %p133 = scmp.ne.s32.totalorder %s122, %s125
      %p134 = scmp.eq.s32.totalorder %s23, 5
      %p135 = por %p133, %p134
      %p136 = scmp.ne.s32.totalorder %s125, %s126
      %p137 = scmp.eq.s32.totalorder %s23, 0
      %p138 = por %p136, %p137
      %p139 = scmp.ne.s32.totalorder %s125, %s126
      %p140 = scmp.eq.s32.totalorder %s24, 5
      %p141 = por %p139, %p140
      %p143 = scmp.ne.s32.totalorder %s126, %s142
      %p144 = scmp.eq.s32.totalorder %s24, 0
      %p145 = por %p143, %p144
      %p146 = scmp.le.s32.totalorder 1, %s18
      %p147 = scmp.lt.s32.totalorder %s18, 7
      %p148 = pnand %p146, %p147
      %p149 = pneg %p148
      // Predicated region
      $region9: #{tpu_custom_call.1} parent=5 // pred_check
        _
      $region10: #{tpu_custom_call.1} parent=5 // pred_check_branch
        %151 = sbr.rel (%p148) target = $region12
      $region11: #{tpu_custom_call.1} parent=5 // pred_region
        %s152 = ssub.s32 %s18, 1
      $region12: #{tpu_custom_call.1} parent=5 // pred_fallthru
        _
      %p153 = scmp.lt.s32.totalorder %s18, 6
      // Predicated region
      $region13: #{tpu_custom_call.1} parent=5 // pred_check
        %p154 = pneg %p153
      $region14: #{tpu_custom_call.1} parent=5 // pred_check_branch
        %156 = sbr.rel (%p154) target = $region16
      $region15: #{tpu_custom_call.1} parent=5 // pred_region
        // Predicated region
        $region17: #{tpu_custom_call.1} parent=15 // pred_check
          %p157 = pneg %p50
        $region18: #{tpu_custom_call.1} parent=15 // pred_check_branch
          %159 = sbr.rel (%p157) target = $region20
        $region19: #{tpu_custom_call.1} parent=15 // pred_region
          %s160 = sand.u32 %s40, 1
          %s161 = scalar_lea.sflag [#allocation4], %s160
          %s162 = sand.u32 %s40, 1
          %s163 = smul.addr %s162, 256
          %s164 = scalar_lea.vmem [#allocation3], %s163
          %s166 = ssub.s32 4096, 4096
          %167 = vsyncadd %s161, %s166
          %s168 = smul.addr %s25, 32
          %s169 = smul.addr %s168, 128
          %s170 = scalar_lea.hbm %s0, %s169
          %s171 = sshll.u32 %s164, 4
          %s172 = int_to_ptr.vmem [resolvable:$true] %s171
          %177 = dma.hbm_to_vmem [thread:$0]  %s170, 4096, %s172, %s161, 1024, 1024, 64
        $region20: #{tpu_custom_call.1} parent=15 // pred_fallthru
          _
        // Predicated region
        $region21: #{tpu_custom_call.1} parent=15 // pred_check
          %p178 = pneg %p76
        $region22: #{tpu_custom_call.1} parent=15 // pred_check_branch
          %180 = sbr.rel (%p178) target = $region24
        $region23: #{tpu_custom_call.1} parent=15 // pred_region
          %s181 = sand.u32 %s18, 1
          %s182 = scalar_lea.sflag [#allocation7], %s181
          %s183 = sand.u32 %s66, 1
          %s184 = smul.addr %s183, 256
          %s185 = scalar_lea.vmem [#allocation6], %s184
          %s187 = ssub.s32 4096, 4096
          %188 = vsyncadd %s182, %s187
          %s189 = smul.addr %s25, 32
          %s190 = smul.addr %s189, 128
          %s191 = scalar_lea.hbm %s1, %s190
          %s192 = sshll.u32 %s185, 4
          %s193 = int_to_ptr.vmem [resolvable:$true] %s192
          %198 = dma.hbm_to_vmem [thread:$0]  %s191, 4096, %s193, %s182, 1024, 1024, 64
        $region24: #{tpu_custom_call.1} parent=15 // pred_fallthru
          _
        // Predicated region
        $region25: #{tpu_custom_call.1} parent=15 // pred_check
          %p199 = pneg %p104
        $region26: #{tpu_custom_call.1} parent=15 // pred_check_branch
          %201 = sbr.rel (%p199) target = $region28
        $region27: #{tpu_custom_call.1} parent=15 // pred_region
          %s202 = sand.u32 %s18, 1
          %s203 = scalar_lea.sflag [#allocation7], %s202
          %s204 = sand.u32 %s94, 1
          %s205 = smul.addr %s204, 8
          %s206 = scalar_lea.vmem [#allocation8], %s205
          %s208 = ssub.s32 128, 128
          %209 = vsyncadd %s203, %s208
          %s210 = smul.addr %s25, 2
          %s211 = sadd.s32 %s26, %s210
          %s212 = smul.addr %s211, 128
          %s213 = scalar_lea.hbm %s2, %s212
          %s215 = sshll.u32 %s206, 4
          %s216 = int_to_ptr.vmem [resolvable:$true] %s215
          %218 = dma.hbm_to_vmem [thread:$0]  %s213, 128, %s216, %s203
        $region28: #{tpu_custom_call.1} parent=15 // pred_fallthru
          _
      $region16: #{tpu_custom_call.1} parent=5 // pred_fallthru
        _
      %p219 = scmp.le.s32.totalorder 1, %s18
      %p220 = scmp.lt.s32.totalorder %s18, 7
      %p221 = pnand %p219, %p220
      %p222 = pneg %p221
      // Predicated region
      $region29: #{tpu_custom_call.1} parent=5 // pred_check
        _
      $region30: #{tpu_custom_call.1} parent=5 // pred_check_branch
        %224 = sbr.rel (%p221) target = $region32
      $region31: #{tpu_custom_call.1} parent=5 // pred_region
        %s225 = ssub.s32 %s18, 1
        %s226 = sand.u32 %s43, 1
        %s227 = scalar_lea.sflag [#allocation4], %s226
        %s228 = sand.u32 %s43, 1
        %s229 = smul.addr %s228, 256
        %s230 = scalar_lea.vmem [#allocation3], %s229
        // Predicated region
        $region33: #{tpu_custom_call.1} parent=31 // pred_check
          %p231 = pneg %p56
        $region34: #{tpu_custom_call.1} parent=31 // pred_check_branch
          %233 = sbr.rel (%p231) target = $region36
        $region35: #{tpu_custom_call.1} parent=31 // pred_region
          %234 = dma.done %s227, 4096
        $region36: #{tpu_custom_call.1} parent=31 // pred_fallthru
          _
        %s235 = sand.u32 %s23, 1
        %s236 = scalar_lea.sflag [#allocation7], %s235
        %s237 = sand.u32 %s69, 1
        %s238 = smul.addr %s237, 256
        %s239 = scalar_lea.vmem [#allocation6], %s238
        // Predicated region
        $region37: #{tpu_custom_call.1} parent=31 // pred_check
          %p240 = pneg %p82
        $region38: #{tpu_custom_call.1} parent=31 // pred_check_branch
          %242 = sbr.rel (%p240) target = $region40
        $region39: #{tpu_custom_call.1} parent=31 // pred_region
          %243 = dma.done %s236, 4096
        $region40: #{tpu_custom_call.1} parent=31 // pred_fallthru
          _
        %s244 = sand.u32 %s23, 1
        %s245 = scalar_lea.sflag [#allocation7], %s244
        %s246 = sand.u32 %s97, 1
        %s247 = smul.addr %s246, 8
        %s248 = scalar_lea.vmem [#allocation8], %s247
        // Predicated region
        $region41: #{tpu_custom_call.1} parent=31 // pred_check
          %p249 = pneg %p110
        $region42: #{tpu_custom_call.1} parent=31 // pred_check_branch
          %251 = sbr.rel (%p249) target = $region44
        $region43: #{tpu_custom_call.1} parent=31 // pred_region
          %252 = dma.done %s245, 128
        $region44: #{tpu_custom_call.1} parent=31 // pred_fallthru
          _
        %s253 = sand.u32 %s43, 1
        %s254 = scalar_lea.sflag [#allocation4], %s253
        %s255 = sand.u32 %s43, 1
        %s256 = smul.addr %s255, 256
        %s257 = scalar_lea.vmem [#allocation3], %s256
        %p258 = pneg %p56
        %p259 = pneg %p53
        %s260 = sand.u32 %s23, 1
        %s261 = scalar_lea.sflag [#allocation7], %s260
        %s262 = sand.u32 %s69, 1
        %s263 = smul.addr %s262, 256
        %s264 = scalar_lea.vmem [#allocation6], %s263
        %p265 = pneg %p82
        %p266 = pneg %p79
        %s267 = sand.u32 %s23, 1
        %s268 = scalar_lea.sflag [#allocation7], %s267
        %s269 = sand.u32 %s97, 1
        %s270 = smul.addr %s269, 8
        %s271 = scalar_lea.vmem [#allocation8], %s270
        %p272 = pneg %p110
        %p273 = pneg %p107
        %p274 = pneg %p138
        %p275 = pneg %p135
        %s276 = sand.u32 %s125, 1
        %s277 = scalar_lea.sflag [#allocation5], %s276
        %s278 = sand.u32 %s125, 1
        %s279 = smul.addr %s278, 64
        %s280 = scalar_lea.vmem [#allocation9], %s279
        %s281 = smul.u32 8, %s27
        %p282 = scmp.eq.s32.totalorder %s27, 0
        // Predicated region
        $region45: #{tpu_custom_call.1} parent=31 // pred_check
          %p283 = pneg %p282
        $region46: #{tpu_custom_call.1} parent=31 // pred_check_branch
          %285 = sbr.rel (%p283) target = $region48
        $region47: #{tpu_custom_call.1} parent=31 // pred_region
          %s286 = smul.u32 %s28, 8
          %s287 = scalar_lea.vmem [#allocation2], %s286
          %vm288 = vcmask 261120
          %289 = vst.msk [vmem:[%s287] sm:$0xff] %vm288, 0.0
        $region48: #{tpu_custom_call.1} parent=31 // pred_fallthru
          _
        %s290 = smul.u32 %s28, 8
        %s291 = scalar_lea.vmem [#allocation2], %s290
        %v292 = vld [vmem:[%s291] sm:$0xff]
        %v293 = vld [vmem:[%s248] sm:$0xff]
        %v294 = vld [vmem:[%s230] sm:$0xff]
        %v295 = vld [vmem:[%s230 + $0x8] sm:$0xff]
        %v296 = vld [vmem:[%s230 + $0x10] sm:$0xff]
        %v297 = vld [vmem:[%s230 + $0x18] sm:$0xff]
        %v298 = vld [vmem:[%s230 + $0x20] sm:$0xff]
        %v299 = vld [vmem:[%s230 + $0x28] sm:$0xff]
        %v300 = vld [vmem:[%s230 + $0x30] sm:$0xff]
        %v301 = vld [vmem:[%s230 + $0x38] sm:$0xff]
        %v302 = vld [vmem:[%s230 + $0x40] sm:$0xff]
        %v303 = vld [vmem:[%s230 + $0x48] sm:$0xff]
        %v304 = vld [vmem:[%s230 + $0x50] sm:$0xff]
        %v305 = vld [vmem:[%s230 + $0x58] sm:$0xff]
        %v306 = vld [vmem:[%s230 + $0x60] sm:$0xff]
        %v307 = vld [vmem:[%s230 + $0x68] sm:$0xff]
        %v308 = vld [vmem:[%s230 + $0x70] sm:$0xff]
        %v309 = vld [vmem:[%s230 + $0x78] sm:$0xff]
        %v310 = vld [vmem:[%s230 + $0x80] sm:$0xff]
        %v311 = vld [vmem:[%s230 + $0x88] sm:$0xff]
        %v312 = vld [vmem:[%s230 + $0x90] sm:$0xff]
        %v313 = vld [vmem:[%s230 + $0x98] sm:$0xff]
        %v314 = vld [vmem:[%s230 + $0xa0] sm:$0xff]
        %v315 = vld [vmem:[%s230 + $0xa8] sm:$0xff]
        %v316 = vld [vmem:[%s230 + $0xb0] sm:$0xff]
        %v317 = vld [vmem:[%s230 + $0xb8] sm:$0xff]
        %v318 = vld [vmem:[%s230 + $0xc0] sm:$0xff]
        %v319 = vld [vmem:[%s230 + $0xc8] sm:$0xff]
        %v320 = vld [vmem:[%s230 + $0xd0] sm:$0xff]
        %v321 = vld [vmem:[%s230 + $0xd8] sm:$0xff]
        %v322 = vld [vmem:[%s230 + $0xe0] sm:$0xff]
        %v323 = vld [vmem:[%s230 + $0xe8] sm:$0xff]
        %v324 = vld [vmem:[%s230 + $0xf0] sm:$0xff]
        %v325 = vld [vmem:[%s230 + $0xf8] sm:$0xff]
        %v326 = vld [vmem:[%s239] sm:$0xff]
        %v327 = vld [vmem:[%s239 + $0x8] sm:$0xff]
        %v328 = vld [vmem:[%s239 + $0x10] sm:$0xff]
        %v329 = vld [vmem:[%s239 + $0x18] sm:$0xff]
        %v330 = vld [vmem:[%s239 + $0x20] sm:$0xff]
        %v331 = vld [vmem:[%s239 + $0x28] sm:$0xff]
        %v332 = vld [vmem:[%s239 + $0x30] sm:$0xff]
        %v333 = vld [vmem:[%s239 + $0x38] sm:$0xff]
        %v334 = vld [vmem:[%s239 + $0x40] sm:$0xff]
        %v335 = vld [vmem:[%s239 + $0x48] sm:$0xff]
        %v336 = vld [vmem:[%s239 + $0x50] sm:$0xff]
        %v337 = vld [vmem:[%s239 + $0x58] sm:$0xff]
        %v338 = vld [vmem:[%s239 + $0x60] sm:$0xff]
        %v339 = vld [vmem:[%s239 + $0x68] sm:$0xff]
        %v340 = vld [vmem:[%s239 + $0x70] sm:$0xff]
        %v341 = vld [vmem:[%s239 + $0x78] sm:$0xff]
        %v342 = vld [vmem:[%s239 + $0x80] sm:$0xff]
        %v343 = vld [vmem:[%s239 + $0x88] sm:$0xff]
        %v344 = vld [vmem:[%s239 + $0x90] sm:$0xff]
        %v345 = vld [vmem:[%s239 + $0x98] sm:$0xff]
        %v346 = vld [vmem:[%s239 + $0xa0] sm:$0xff]
        %v347 = vld [vmem:[%s239 + $0xa8] sm:$0xff]
        %v348 = vld [vmem:[%s239 + $0xb0] sm:$0xff]
        %v349 = vld [vmem:[%s239 + $0xb8] sm:$0xff]
        %v350 = vld [vmem:[%s239 + $0xc0] sm:$0xff]
        %v351 = vld [vmem:[%s239 + $0xc8] sm:$0xff]
        %v352 = vld [vmem:[%s239 + $0xd0] sm:$0xff]
        %v353 = vld [vmem:[%s239 + $0xd8] sm:$0xff]
        %v354 = vld [vmem:[%s239 + $0xe0] sm:$0xff]
        %v355 = vld [vmem:[%s239 + $0xe8] sm:$0xff]
        %v356 = vld [vmem:[%s239 + $0xf0] sm:$0xff]
        %v357 = vld [vmem:[%s239 + $0xf8] sm:$0xff]
        %vm358 = vcmask 261120
        %v360 = vsel %vm358, %v293, 0
        %362 = vmatprep.subr.mxu0 %v327
        %363 = vmatpush1.msra.mxu0 %v326
        %364 = vmatprep.subr.mxu0 %v335
        %365 = vmatpush1.msra.mxu0 %v334
        %366 = vmatprep.subr.mxu0 %v343
        %367 = vmatpush1.msra.mxu0 %v342
        %368 = vmatprep.subr.mxu0 %v351
        %369 = vmatpush1.msra.mxu0 %v350
        %370 = vmatprep.subr.mxu0 0.0
        %371 = vmatpush1.msra.mxu0 0.0
        %372 = vmatprep.subr.mxu0 0.0
        %373 = vmatpush1.msra.mxu0 0.0
        %374 = vmatprep.subr.mxu0 0.0
        %375 = vmatpush1.msra.mxu0 0.0
        %376 = vmatprep.subr.mxu0 0.0
        %377 = vmatpush1.msra.mxu0 0.0
        %378 = vmatprep.subr.mxu0 0.0
        %379 = vmatpush1.msra.mxu0 0.0
        %380 = vmatprep.subr.mxu0 0.0
        %381 = vmatpush1.msra.mxu0 0.0
        %382 = vmatprep.subr.mxu0 0.0
        %383 = vmatpush1.msra.mxu0 0.0
        %384 = vmatprep.subr.mxu0 0.0
        %385 = vmatpush1.msra.mxu0 0.0
        %386 = vmatprep.subr.mxu0 0.0
        %387 = vmatpush1.msra.mxu0 0.0
        %388 = vmatprep.subr.mxu0 0.0
        %389 = vmatpush1.msra.mxu0 0.0
        %390 = vmatprep.subr.mxu0 0.0
        %391 = vmatpush1.msra.mxu0 0.0
        %392 = vmatprep.subr.mxu0 0.0
        %393 = vmatpush1.msra.mxu0 0.0
        %394 = vmatprep.subr.mxu0 0.0
        %395 = vmatpush1.msra.mxu0 0.0
        %396 = vmatprep.subr.mxu0 0.0
        %397 = vmatpush1.msra.mxu0 0.0
        %398 = vmatprep.subr.mxu0 0.0
        %399 = vmatpush1.msra.mxu0 0.0
        %400 = vmatprep.subr.mxu0 0.0
        %401 = vmatpush1.msra.mxu0 0.0
        %402 = vmatprep.subr.mxu0 0.0
        %403 = vmatpush1.msra.mxu0 0.0
        %404 = vmatprep.subr.mxu0 0.0
        %405 = vmatpush1.msra.mxu0 0.0
        %406 = vmatprep.subr.mxu0 0.0
        %407 = vmatpush1.msra.mxu0 0.0
        %408 = vmatprep.subr.mxu0 0.0
        %409 = vmatpush1.msra.mxu0 0.0
        %410 = vmatprep.subr.mxu0 0.0
        %411 = vmatpush1.msra.mxu0 0.0
        %412 = vmatprep.subr.mxu0 0.0
        %413 = vmatpush1.msra.mxu0 0.0
        %414 = vmatprep.subr.mxu0 0.0
        %415 = vmatpush1.msra.mxu0 0.0
        %416 = vmatprep.subr.mxu0 0.0
        %417 = vmatpush1.msra.mxu0 0.0
        %418 = vmatprep.subr.mxu0 0.0
        %419 = vmatpush1.msra.mxu0 0.0
        %420 = vmatprep.subr.mxu0 0.0
        %421 = vmatpush1.msra.mxu0 0.0
        %422 = vmatprep.subr.mxu0 0.0
        %423 = vmatpush1.msra.mxu0 0.0
        %424 = vmatprep.subr.mxu0 0.0
        %425 = vmatpush1.msra.mxu0 0.0
        %426 = vmatprep.mubr.f32.mxu0 0.0
        %427 = vmatmul.mubr.f32.gmra.mrb[0].mxu0 %v360
        %v428 = vpop.f32.mrb[0].mxu0
        %v429 = vadd.f32 0.0, %v428
        %v430 = vpop.f32.mrb[0].mxu0
        %v431 = vadd.f32 0.0, %v430
        %432 = vdwg.mxu0
        %433 = vmatprep.subr.mxu0 %v329
        %434 = vmatpush1.msra.mxu0 %v328
        %435 = vmatprep.subr.mxu0 %v337
        %436 = vmatpush1.msra.mxu0 %v336
        %437 = vmatprep.subr.mxu0 %v345
        %438 = vmatpush1.msra.mxu0 %v344
        %439 = vmatprep.subr.mxu0 %v353
        %440 = vmatpush1.msra.mxu0 %v352
        %441 = vmatprep.subr.mxu0 0.0
        %442 = vmatpush1.msra.mxu0 0.0
        %443 = vmatprep.subr.mxu0 0.0
        %444 = vmatpush1.msra.mxu0 0.0
        %445 = vmatprep.subr.mxu0 0.0
        %446 = vmatpush1.msra.mxu0 0.0
        %447 = vmatprep.subr.mxu0 0.0
        %448 = vmatpush1.msra.mxu0 0.0
        %449 = vmatprep.subr.mxu0 0.0
        %450 = vmatpush1.msra.mxu0 0.0
        %451 = vmatprep.subr.mxu0 0.0
        %452 = vmatpush1.msra.mxu0 0.0
        %453 = vmatprep.subr.mxu0 0.0
        %454 = vmatpush1.msra.mxu0 0.0
        %455 = vmatprep.subr.mxu0 0.0
        %456 = vmatpush1.msra.mxu0 0.0
        %457 = vmatprep.subr.mxu0 0.0
        %458 = vmatpush1.msra.mxu0 0.0
        %459 = vmatprep.subr.mxu0 0.0
        %460 = vmatpush1.msra.mxu0 0.0
        %461 = vmatprep.subr.mxu0 0.0
        %462 = vmatpush1.msra.mxu0 0.0
        %463 = vmatprep.subr.mxu0 0.0
        %464 = vmatpush1.msra.mxu0 0.0
        %465 = vmatprep.subr.mxu0 0.0
        %466 = vmatpush1.msra.mxu0 0.0
        %467 = vmatprep.subr.mxu0 0.0
        %468 = vmatpush1.msra.mxu0 0.0
        %469 = vmatprep.subr.mxu0 0.0
        %470 = vmatpush1.msra.mxu0 0.0
        %471 = vmatprep.subr.mxu0 0.0
        %472 = vmatpush1.msra.mxu0 0.0
        %473 = vmatprep.subr.mxu0 0.0
        %474 = vmatpush1.msra.mxu0 0.0
        %475 = vmatprep.subr.mxu0 0.0
        %476 = vmatpush1.msra.mxu0 0.0
        %477 = vmatprep.subr.mxu0 0.0
        %478 = vmatpush1.msra.mxu0 0.0
        %479 = vmatprep.subr.mxu0 0.0
        %480 = vmatpush1.msra.mxu0 0.0
        %481 = vmatprep.subr.mxu0 0.0
        %482 = vmatpush1.msra.mxu0 0.0
        %483 = vmatprep.subr.mxu0 0.0
        %484 = vmatpush1.msra.mxu0 0.0
        %485 = vmatprep.subr.mxu0 0.0
        %486 = vmatpush1.msra.mxu0 0.0
        %487 = vmatprep.subr.mxu0 0.0
        %488 = vmatpush1.msra.mxu0 0.0
        %489 = vmatprep.subr.mxu0 0.0
        %490 = vmatpush1.msra.mxu0 0.0
        %491 = vmatprep.subr.mxu0 0.0
        %492 = vmatpush1.msra.mxu0 0.0
        %493 = vmatprep.subr.mxu0 0.0
        %494 = vmatpush1.msra.mxu0 0.0
        %495 = vmatprep.subr.mxu0 0.0
        %496 = vmatpush1.msra.mxu0 0.0
        %497 = vmatprep.mubr.f32.mxu0 0.0
        %498 = vmatmul.mubr.f32.gmra.mrb[0].mxu0 %v360
        %v499 = vpop.f32.mrb[0].mxu0
        %v500 = vadd.f32 0.0, %v499
        %v501 = vpop.f32.mrb[0].mxu0
        %v502 = vadd.f32 0.0, %v501
        %503 = vdwg.mxu0
        %504 = vmatprep.subr.mxu0 %v331
        %505 = vmatpush1.msra.mxu0 %v330
        %506 = vmatprep.subr.mxu0 %v339
        %507 = vmatpush1.msra.mxu0 %v338
        %508 = vmatprep.subr.mxu0 %v347
        %509 = vmatpush1.msra.mxu0 %v346
        %510 = vmatprep.subr.mxu0 %v355
        %511 = vmatpush1.msra.mxu0 %v354
        %512 = vmatprep.subr.mxu0 0.0
        %513 = vmatpush1.msra.mxu0 0.0
        %514 = vmatprep.subr.mxu0 0.0
        %515 = vmatpush1.msra.mxu0 0.0
        %516 = vmatprep.subr.mxu0 0.0
        %517 = vmatpush1.msra.mxu0 0.0
        %518 = vmatprep.subr.mxu0 0.0
        %519 = vmatpush1.msra.mxu0 0.0
        %520 = vmatprep.subr.mxu0 0.0
        %521 = vmatpush1.msra.mxu0 0.0
        %522 = vmatprep.subr.mxu0 0.0
        %523 = vmatpush1.msra.mxu0 0.0
        %524 = vmatprep.subr.mxu0 0.0
        %525 = vmatpush1.msra.mxu0 0.0
        %526 = vmatprep.subr.mxu0 0.0
        %527 = vmatpush1.msra.mxu0 0.0
        %528 = vmatprep.subr.mxu0 0.0
        %529 = vmatpush1.msra.mxu0 0.0
        %530 = vmatprep.subr.mxu0 0.0
        %531 = vmatpush1.msra.mxu0 0.0
        %532 = vmatprep.subr.mxu0 0.0
        %533 = vmatpush1.msra.mxu0 0.0
        %534 = vmatprep.subr.mxu0 0.0
        %535 = vmatpush1.msra.mxu0 0.0
        %536 = vmatprep.subr.mxu0 0.0
        %537 = vmatpush1.msra.mxu0 0.0
        %538 = vmatprep.subr.mxu0 0.0
        %539 = vmatpush1.msra.mxu0 0.0
        %540 = vmatprep.subr.mxu0 0.0
        %541 = vmatpush1.msra.mxu0 0.0
        %542 = vmatprep.subr.mxu0 0.0
        %543 = vmatpush1.msra.mxu0 0.0
        %544 = vmatprep.subr.mxu0 0.0
        %545 = vmatpush1.msra.mxu0 0.0
        %546 = vmatprep.subr.mxu0 0.0
        %547 = vmatpush1.msra.mxu0 0.0
        %548 = vmatprep.subr.mxu0 0.0
        %549 = vmatpush1.msra.mxu0 0.0
        %550 = vmatprep.subr.mxu0 0.0
        %551 = vmatpush1.msra.mxu0 0.0
        %552 = vmatprep.subr.mxu0 0.0
        %553 = vmatpush1.msra.mxu0 0.0
        %554 = vmatprep.subr.mxu0 0.0
        %555 = vmatpush1.msra.mxu0 0.0
        %556 = vmatprep.subr.mxu0 0.0
        %557 = vmatpush1.msra.mxu0 0.0
        %558 = vmatprep.subr.mxu0 0.0
        %559 = vmatpush1.msra.mxu0 0.0
        %560 = vmatprep.subr.mxu0 0.0
        %561 = vmatpush1.msra.mxu0 0.0
        %562 = vmatprep.subr.mxu0 0.0
        %563 = vmatpush1.msra.mxu0 0.0
        %564 = vmatprep.subr.mxu0 0.0
        %565 = vmatpush1.msra.mxu0 0.0
        %566 = vmatprep.subr.mxu0 0.0
        %567 = vmatpush1.msra.mxu0 0.0
        %568 = vmatprep.mubr.f32.mxu0 0.0
        %569 = vmatmul.mubr.f32.gmra.mrb[0].mxu0 %v360
        %v570 = vpop.f32.mrb[0].mxu0
        %v571 = vadd.f32 0.0, %v570
        %v572 = vpop.f32.mrb[0].mxu0
        %v573 = vadd.f32 0.0, %v572
        %574 = vdwg.mxu0
        %575 = vmatprep.subr.mxu0 %v333
        %576 = vmatpush1.msra.mxu0 %v332
        %577 = vmatprep.subr.mxu0 %v341
        %578 = vmatpush1.msra.mxu0 %v340
        %579 = vmatprep.subr.mxu0 %v349
        %580 = vmatpush1.msra.mxu0 %v348
        %581 = vmatprep.subr.mxu0 %v357
        %582 = vmatpush1.msra.mxu0 %v356
        %583 = vmatprep.subr.mxu0 0.0
        %584 = vmatpush1.msra.mxu0 0.0
        %585 = vmatprep.subr.mxu0 0.0
        %586 = vmatpush1.msra.mxu0 0.0
        %587 = vmatprep.subr.mxu0 0.0
        %588 = vmatpush1.msra.mxu0 0.0
        %589 = vmatprep.subr.mxu0 0.0
        %590 = vmatpush1.msra.mxu0 0.0
        %591 = vmatprep.subr.mxu0 0.0
        %592 = vmatpush1.msra.mxu0 0.0
        %593 = vmatprep.subr.mxu0 0.0
        %594 = vmatpush1.msra.mxu0 0.0
        %595 = vmatprep.subr.mxu0 0.0
        %596 = vmatpush1.msra.mxu0 0.0
        %597 = vmatprep.subr.mxu0 0.0
        %598 = vmatpush1.msra.mxu0 0.0
        %599 = vmatprep.subr.mxu0 0.0
        %600 = vmatpush1.msra.mxu0 0.0
        %601 = vmatprep.subr.mxu0 0.0
        %602 = vmatpush1.msra.mxu0 0.0
        %603 = vmatprep.subr.mxu0 0.0
        %604 = vmatpush1.msra.mxu0 0.0
        %605 = vmatprep.subr.mxu0 0.0
        %606 = vmatpush1.msra.mxu0 0.0
        %607 = vmatprep.subr.mxu0 0.0
        %608 = vmatpush1.msra.mxu0 0.0
        %609 = vmatprep.subr.mxu0 0.0
        %610 = vmatpush1.msra.mxu0 0.0
        %611 = vmatprep.subr.mxu0 0.0
        %612 = vmatpush1.msra.mxu0 0.0
        %613 = vmatprep.subr.mxu0 0.0
        %614 = vmatpush1.msra.mxu0 0.0
        %615 = vmatprep.subr.mxu0 0.0
        %616 = vmatpush1.msra.mxu0 0.0
        %617 = vmatprep.subr.mxu0 0.0
        %618 = vmatpush1.msra.mxu0 0.0
        %619 = vmatprep.subr.mxu0 0.0
        %620 = vmatpush1.msra.mxu0 0.0
        %621 = vmatprep.subr.mxu0 0.0
        %622 = vmatpush1.msra.mxu0 0.0
        %623 = vmatprep.subr.mxu0 0.0
        %624 = vmatpush1.msra.mxu0 0.0
        %625 = vmatprep.subr.mxu0 0.0
        %626 = vmatpush1.msra.mxu0 0.0
        %627 = vmatprep.subr.mxu0 0.0
        %628 = vmatpush1.msra.mxu0 0.0
        %629 = vmatprep.subr.mxu0 0.0
        %630 = vmatpush1.msra.mxu0 0.0
        %631 = vmatprep.subr.mxu0 0.0
        %632 = vmatpush1.msra.mxu0 0.0
        %633 = vmatprep.subr.mxu0 0.0
        %634 = vmatpush1.msra.mxu0 0.0
        %635 = vmatprep.subr.mxu0 0.0
        %636 = vmatpush1.msra.mxu0 0.0
        %637 = vmatprep.subr.mxu0 0.0
        %638 = vmatpush1.msra.mxu0 0.0
        %639 = vmatprep.mubr.f32.mxu0 0.0
        %640 = vmatmul.mubr.f32.gmra.mrb[0].mxu0 %v360
        %v641 = vpop.f32.mrb[0].mxu0
        %v642 = vadd.f32 0.0, %v641
        %v643 = vpop.f32.mrb[0].mxu0
        %v644 = vadd.f32 0.0, %v643
        %645 = vdwg.mxu0
        %v647 = vsel %vm358, %v292, 0
        %649 = vmatprep.subr.mxu0 %v295
        %650 = vmatpush1.msra.mxu0 %v294
        %651 = vmatprep.subr.mxu0 %v303
        %652 = vmatpush1.msra.mxu0 %v302
        %653 = vmatprep.subr.mxu0 %v311
        %654 = vmatpush1.msra.mxu0 %v310
        %655 = vmatprep.subr.mxu0 %v319
        %656 = vmatpush1.msra.mxu0 %v318
        %657 = vmatprep.subr.mxu0 0.0
        %658 = vmatpush1.msra.mxu0 0.0
        %659 = vmatprep.subr.mxu0 0.0
        %660 = vmatpush1.msra.mxu0 0.0
        %661 = vmatprep.subr.mxu0 0.0
        %662 = vmatpush1.msra.mxu0 0.0
        %663 = vmatprep.subr.mxu0 0.0
        %664 = vmatpush1.msra.mxu0 0.0
        %665 = vmatprep.subr.mxu0 0.0
        %666 = vmatpush1.msra.mxu0 0.0
        %667 = vmatprep.subr.mxu0 0.0
        %668 = vmatpush1.msra.mxu0 0.0
        %669 = vmatprep.subr.mxu0 0.0
        %670 = vmatpush1.msra.mxu0 0.0
        %671 = vmatprep.subr.mxu0 0.0
        %672 = vmatpush1.msra.mxu0 0.0
        %673 = vmatprep.subr.mxu0 0.0
        %674 = vmatpush1.msra.mxu0 0.0
        %675 = vmatprep.subr.mxu0 0.0
        %676 = vmatpush1.msra.mxu0 0.0
        %677 = vmatprep.subr.mxu0 0.0
        %678 = vmatpush1.msra.mxu0 0.0
        %679 = vmatprep.subr.mxu0 0.0
        %680 = vmatpush1.msra.mxu0 0.0
        %681 = vmatprep.subr.mxu0 0.0
        %682 = vmatpush1.msra.mxu0 0.0
        %683 = vmatprep.subr.mxu0 0.0
        %684 = vmatpush1.msra.mxu0 0.0
        %685 = vmatprep.subr.mxu0 0.0
        %686 = vmatpush1.msra.mxu0 0.0
        %687 = vmatprep.subr.mxu0 0.0
        %688 = vmatpush1.msra.mxu0 0.0
        %689 = vmatprep.subr.mxu0 0.0
        %690 = vmatpush1.msra.mxu0 0.0
        %691 = vmatprep.subr.mxu0 0.0
        %692 = vmatpush1.msra.mxu0 0.0
        %693 = vmatprep.subr.mxu0 0.0
        %694 = vmatpush1.msra.mxu0 0.0
        %695 = vmatprep.subr.mxu0 0.0
        %696 = vmatpush1.msra.mxu0 0.0
        %697 = vmatprep.subr.mxu0 0.0
        %698 = vmatpush1.msra.mxu0 0.0
        %699 = vmatprep.subr.mxu0 0.0
        %700 = vmatpush1.msra.mxu0 0.0
        %701 = vmatprep.subr.mxu0 0.0
        %702 = vmatpush1.msra.mxu0 0.0
        %703 = vmatprep.subr.mxu0 0.0
        %704 = vmatpush1.msra.mxu0 0.0
        %705 = vmatprep.subr.mxu0 0.0
        %706 = vmatpush1.msra.mxu0 0.0
        %707 = vmatprep.subr.mxu0 0.0
        %708 = vmatpush1.msra.mxu0 0.0
        %709 = vmatprep.subr.mxu0 0.0
        %710 = vmatpush1.msra.mxu0 0.0
        %711 = vmatprep.subr.mxu0 0.0
        %712 = vmatpush1.msra.mxu0 0.0
        %713 = vmatprep.mubr.f32.mxu0 0.0
        %714 = vmatmul.mubr.f32.gmra.mrb[0].mxu0 %v647
        %v715 = vpop.f32.mrb[0].mxu0
        %v716 = vadd.f32 %v429, %v715
        %v717 = vpop.f32.mrb[0].mxu0
        %v718 = vadd.f32 %v431, %v717
        %719 = vdwg.mxu0
        %720 = vmatprep.subr.mxu0 %v297
        %721 = vmatpush1.msra.mxu0 %v296
        %722 = vmatprep.subr.mxu0 %v305
        %723 = vmatpush1.msra.mxu0 %v304
        %724 = vmatprep.subr.mxu0 %v313
        %725 = vmatpush1.msra.mxu0 %v312
        %726 = vmatprep.subr.mxu0 %v321
        %727 = vmatpush1.msra.mxu0 %v320
        %728 = vmatprep.subr.mxu0 0.0
        %729 = vmatpush1.msra.mxu0 0.0
        %730 = vmatprep.subr.mxu0 0.0
        %731 = vmatpush1.msra.mxu0 0.0
        %732 = vmatprep.subr.mxu0 0.0
        %733 = vmatpush1.msra.mxu0 0.0
        %734 = vmatprep.subr.mxu0 0.0
        %735 = vmatpush1.msra.mxu0 0.0
        %736 = vmatprep.subr.mxu0 0.0
        %737 = vmatpush1.msra.mxu0 0.0
        %738 = vmatprep.subr.mxu0 0.0
        %739 = vmatpush1.msra.mxu0 0.0
        %740 = vmatprep.subr.mxu0 0.0
        %741 = vmatpush1.msra.mxu0 0.0
        %742 = vmatprep.subr.mxu0 0.0
        %743 = vmatpush1.msra.mxu0 0.0
        %744 = vmatprep.subr.mxu0 0.0
        %745 = vmatpush1.msra.mxu0 0.0
        %746 = vmatprep.subr.mxu0 0.0
        %747 = vmatpush1.msra.mxu0 0.0
        %748 = vmatprep.subr.mxu0 0.0
        %749 = vmatpush1.msra.mxu0 0.0
        %750 = vmatprep.subr.mxu0 0.0
        %751 = vmatpush1.msra.mxu0 0.0
        %752 = vmatprep.subr.mxu0 0.0
        %753 = vmatpush1.msra.mxu0 0.0
        %754 = vmatprep.subr.mxu0 0.0
        %755 = vmatpush1.msra.mxu0 0.0
        %756 = vmatprep.subr.mxu0 0.0
        %757 = vmatpush1.msra.mxu0 0.0
        %758 = vmatprep.subr.mxu0 0.0
        %759 = vmatpush1.msra.mxu0 0.0
        %760 = vmatprep.subr.mxu0 0.0
        %761 = vmatpush1.msra.mxu0 0.0
        %762 = vmatprep.subr.mxu0 0.0
        %763 = vmatpush1.msra.mxu0 0.0
        %764 = vmatprep.subr.mxu0 0.0
        %765 = vmatpush1.msra.mxu0 0.0
        %766 = vmatprep.subr.mxu0 0.0
        %767 = vmatpush1.msra.mxu0 0.0
        %768 = vmatprep.subr.mxu0 0.0
        %769 = vmatpush1.msra.mxu0 0.0
        %770 = vmatprep.subr.mxu0 0.0
        %771 = vmatpush1.msra.mxu0 0.0
        %772 = vmatprep.subr.mxu0 0.0
        %773 = vmatpush1.msra.mxu0 0.0
        %774 = vmatprep.subr.mxu0 0.0
        %775 = vmatpush1.msra.mxu0 0.0
        %776 = vmatprep.subr.mxu0 0.0
        %777 = vmatpush1.msra.mxu0 0.0
        %778 = vmatprep.subr.mxu0 0.0
        %779 = vmatpush1.msra.mxu0 0.0
        %780 = vmatprep.subr.mxu0 0.0
        %781 = vmatpush1.msra.mxu0 0.0
        %782 = vmatprep.subr.mxu0 0.0
        %783 = vmatpush1.msra.mxu0 0.0
        %784 = vmatprep.mubr.f32.mxu0 0.0
        %785 = vmatmul.mubr.f32.gmra.mrb[0].mxu0 %v647
        %v786 = vpop.f32.mrb[0].mxu0
        %v787 = vadd.f32 %v500, %v786
        %v788 = vpop.f32.mrb[0].mxu0
        %v789 = vadd.f32 %v502, %v788
        %790 = vdwg.mxu0
        %791 = vmatprep.subr.mxu0 %v299
        %792 = vmatpush1.msra.mxu0 %v298
        %793 = vmatprep.subr.mxu0 %v307
        %794 = vmatpush1.msra.mxu0 %v306
        %795 = vmatprep.subr.mxu0 %v315
        %796 = vmatpush1.msra.mxu0 %v314
        %797 = vmatprep.subr.mxu0 %v323
        %798 = vmatpush1.msra.mxu0 %v322
        %799 = vmatprep.subr.mxu0 0.0
        %800 = vmatpush1.msra.mxu0 0.0
        %801 = vmatprep.subr.mxu0 0.0
        %802 = vmatpush1.msra.mxu0 0.0
        %803 = vmatprep.subr.mxu0 0.0
        %804 = vmatpush1.msra.mxu0 0.0
        %805 = vmatprep.subr.mxu0 0.0
        %806 = vmatpush1.msra.mxu0 0.0
        %807 = vmatprep.subr.mxu0 0.0
        %808 = vmatpush1.msra.mxu0 0.0
        %809 = vmatprep.subr.mxu0 0.0
        %810 = vmatpush1.msra.mxu0 0.0
        %811 = vmatprep.subr.mxu0 0.0
        %812 = vmatpush1.msra.mxu0 0.0
        %813 = vmatprep.subr.mxu0 0.0
        %814 = vmatpush1.msra.mxu0 0.0
        %815 = vmatprep.subr.mxu0 0.0
        %816 = vmatpush1.msra.mxu0 0.0
        %817 = vmatprep.subr.mxu0 0.0
        %818 = vmatpush1.msra.mxu0 0.0
        %819 = vmatprep.subr.mxu0 0.0
        %820 = vmatpush1.msra.mxu0 0.0
        %821 = vmatprep.subr.mxu0 0.0
        %822 = vmatpush1.msra.mxu0 0.0
        %823 = vmatprep.subr.mxu0 0.0
        %824 = vmatpush1.msra.mxu0 0.0
        %825 = vmatprep.subr.mxu0 0.0
        %826 = vmatpush1.msra.mxu0 0.0
        %827 = vmatprep.subr.mxu0 0.0
        %828 = vmatpush1.msra.mxu0 0.0
        %829 = vmatprep.subr.mxu0 0.0
        %830 = vmatpush1.msra.mxu0 0.0
        %831 = vmatprep.subr.mxu0 0.0
        %832 = vmatpush1.msra.mxu0 0.0
        %833 = vmatprep.subr.mxu0 0.0
        %834 = vmatpush1.msra.mxu0 0.0
        %835 = vmatprep.subr.mxu0 0.0
        %836 = vmatpush1.msra.mxu0 0.0
        %837 = vmatprep.subr.mxu0 0.0
        %838 = vmatpush1.msra.mxu0 0.0
        %839 = vmatprep.subr.mxu0 0.0
        %840 = vmatpush1.msra.mxu0 0.0
        %841 = vmatprep.subr.mxu0 0.0
        %842 = vmatpush1.msra.mxu0 0.0
        %843 = vmatprep.subr.mxu0 0.0
        %844 = vmatpush1.msra.mxu0 0.0
        %845 = vmatprep.subr.mxu0 0.0
        %846 = vmatpush1.msra.mxu0 0.0
        %847 = vmatprep.subr.mxu0 0.0
        %848 = vmatpush1.msra.mxu0 0.0
        %849 = vmatprep.subr.mxu0 0.0
        %850 = vmatpush1.msra.mxu0 0.0
        %851 = vmatprep.subr.mxu0 0.0
        %852 = vmatpush1.msra.mxu0 0.0
        %853 = vmatprep.subr.mxu0 0.0
        %854 = vmatpush1.msra.mxu0 0.0
        %855 = vmatprep.mubr.f32.mxu0 0.0
        %856 = vmatmul.mubr.f32.gmra.mrb[0].mxu0 %v647
        %v857 = vpop.f32.mrb[0].mxu0
        %v858 = vadd.f32 %v571, %v857
        %v859 = vpop.f32.mrb[0].mxu0
        %v860 = vadd.f32 %v573, %v859
        %861 = vdwg.mxu0
        %862 = vmatprep.subr.mxu0 %v301
        %863 = vmatpush1.msra.mxu0 %v300
        %864 = vmatprep.subr.mxu0 %v309
        %865 = vmatpush1.msra.mxu0 %v308
        %866 = vmatprep.subr.mxu0 %v317
        %867 = vmatpush1.msra.mxu0 %v316
        %868 = vmatprep.subr.mxu0 %v325
        %869 = vmatpush1.msra.mxu0 %v324
        %870 = vmatprep.subr.mxu0 0.0
        %871 = vmatpush1.msra.mxu0 0.0
        %872 = vmatprep.subr.mxu0 0.0
        %873 = vmatpush1.msra.mxu0 0.0
        %874 = vmatprep.subr.mxu0 0.0
        %875 = vmatpush1.msra.mxu0 0.0
        %876 = vmatprep.subr.mxu0 0.0
        %877 = vmatpush1.msra.mxu0 0.0
        %878 = vmatprep.subr.mxu0 0.0
        %879 = vmatpush1.msra.mxu0 0.0
        %880 = vmatprep.subr.mxu0 0.0
        %881 = vmatpush1.msra.mxu0 0.0
        %882 = vmatprep.subr.mxu0 0.0
        %883 = vmatpush1.msra.mxu0 0.0
        %884 = vmatprep.subr.mxu0 0.0
        %885 = vmatpush1.msra.mxu0 0.0
        %886 = vmatprep.subr.mxu0 0.0
        %887 = vmatpush1.msra.mxu0 0.0
        %888 = vmatprep.subr.mxu0 0.0
        %889 = vmatpush1.msra.mxu0 0.0
        %890 = vmatprep.subr.mxu0 0.0
        %891 = vmatpush1.msra.mxu0 0.0
        %892 = vmatprep.subr.mxu0 0.0
        %893 = vmatpush1.msra.mxu0 0.0
        %894 = vmatprep.subr.mxu0 0.0
        %895 = vmatpush1.msra.mxu0 0.0
        %896 = vmatprep.subr.mxu0 0.0
        %897 = vmatpush1.msra.mxu0 0.0
        %898 = vmatprep.subr.mxu0 0.0
        %899 = vmatpush1.msra.mxu0 0.0
        %900 = vmatprep.subr.mxu0 0.0
        %901 = vmatpush1.msra.mxu0 0.0
        %902 = vmatprep.subr.mxu0 0.0
        %903 = vmatpush1.msra.mxu0 0.0
        %904 = vmatprep.subr.mxu0 0.0
        %905 = vmatpush1.msra.mxu0 0.0
        %906 = vmatprep.subr.mxu0 0.0
        %907 = vmatpush1.msra.mxu0 0.0
        %908 = vmatprep.subr.mxu0 0.0
        %909 = vmatpush1.msra.mxu0 0.0
        %910 = vmatprep.subr.mxu0 0.0
        %911 = vmatpush1.msra.mxu0 0.0
        %912 = vmatprep.subr.mxu0 0.0
        %913 = vmatpush1.msra.mxu0 0.0
        %914 = vmatprep.subr.mxu0 0.0
        %915 = vmatpush1.msra.mxu0 0.0
        %916 = vmatprep.subr.mxu0 0.0
        %917 = vmatpush1.msra.mxu0 0.0
        %918 = vmatprep.subr.mxu0 0.0
        %919 = vmatpush1.msra.mxu0 0.0
        %920 = vmatprep.subr.mxu0 0.0
        %921 = vmatpush1.msra.mxu0 0.0
        %922 = vmatprep.subr.mxu0 0.0
        %923 = vmatpush1.msra.mxu0 0.0
        %924 = vmatprep.subr.mxu0 0.0
        %925 = vmatpush1.msra.mxu0 0.0
        %926 = vmatprep.mubr.f32.mxu0 0.0
        %927 = vmatmul.mubr.f32.gmra.mrb[0].mxu0 %v647
        %v928 = vpop.f32.mrb[0].mxu0
        %v929 = vadd.f32 %v642, %v928
        %v930 = vpop.f32.mrb[0].mxu0
        %v931 = vadd.f32 %v644, %v930
        %932 = vdwg.mxu0
        %933 = vst [vmem:[%s280] sm:$0xff] %v716
        %934 = vst [vmem:[%s280 + $0x8] sm:$0xff] %v718
        %935 = vst [vmem:[%s280 + $0x10] sm:$0xff] %v787
        %936 = vst [vmem:[%s280 + $0x18] sm:$0xff] %v789
        %937 = vst [vmem:[%s280 + $0x20] sm:$0xff] %v858
        %938 = vst [vmem:[%s280 + $0x28] sm:$0xff] %v860
        %939 = vst [vmem:[%s280 + $0x30] sm:$0xff] %v929
        %940 = vst [vmem:[%s280 + $0x38] sm:$0xff] %v931
        %942 = vrot.lane.b32.xlu0 %v931, 32
        %v943 = vpop.permute.xlu0 %942
        %945 = vst.msk [vmem:[%s291] sm:$0xff] %vm358, %v943
        %s946 = sand.u32 %s125, 1
        %s947 = scalar_lea.sflag [#allocation5], %s946
        %s948 = sand.u32 %s125, 1
        %s949 = smul.addr %s948, 64
        %s950 = scalar_lea.vmem [#allocation9], %s949
        // Predicated region
        $region49: #{tpu_custom_call.1} parent=31 // pred_check
          %p951 = pneg %p135
        $region50: #{tpu_custom_call.1} parent=31 // pred_check_branch
          %953 = sbr.rel (%p951) target = $region52
        $region51: #{tpu_custom_call.1} parent=31 // pred_region
          %s954 = smul.u32 8, %s27
          %s956 = ssub.s32 1024, 1024
          %957 = vsyncadd %s947, %s956
          %s958 = smul.addr %s28, 24
          %s959 = sadd.s32 %s954, %s958
          %s960 = smul.addr %s959, 128
          %s961 = scalar_lea.hbm %s3, %s960
          %s963 = sshll.u32 %s950, 4
          %s964 = int_to_ptr.vmem [resolvable:$true] %s963
          %966 = dma.vmem_to_hbm [thread:$0]  %s964, 1024, %s961, %s947
        $region52: #{tpu_custom_call.1} parent=31 // pred_fallthru
          _
      $region32: #{tpu_custom_call.1} parent=5 // pred_fallthru
        _
      %p967 = scmp.le.s32.totalorder 2, %s18
      // Predicated region
      $region53: #{tpu_custom_call.1} parent=5 // pred_check
        %p968 = pneg %p967
      $region54: #{tpu_custom_call.1} parent=5 // pred_check_branch
        %970 = sbr.rel (%p968) target = $region56
      $region55: #{tpu_custom_call.1} parent=5 // pred_region
        %s971 = ssub.s32 %s18, 2
        // Predicated region
        $region57: #{tpu_custom_call.1} parent=55 // pred_check
          %p972 = pneg %p141
        $region58: #{tpu_custom_call.1} parent=55 // pred_check_branch
          %974 = sbr.rel (%p972) target = $region60
        $region59: #{tpu_custom_call.1} parent=55 // pred_region
          %s975 = sand.u32 %s126, 1
          %s976 = scalar_lea.sflag [#allocation5], %s975
          %s977 = sand.u32 %s126, 1
          %s978 = smul.addr %s977, 64
          %s979 = scalar_lea.vmem [#allocation9], %s978
          %980 = dma.done %s976, 1024
        $region60: #{tpu_custom_call.1} parent=55 // pred_fallthru
          _
      $region56: #{tpu_custom_call.1} parent=5 // pred_fallthru
        _
    $region6: #{tpu_custom_call.1} parent=1 // loop_footer
      %s22 = sadd.s32 1, %s18
    $region7: #{tpu_custom_call.1} parent=1 // loop_footer_branch
      %17 = sbr.rel target = $region3
    $region8: #{tpu_custom_call.1} parent=1 // loop_exit
      _
    %981 = vsyncpa [#allocation4], 1
    %s982 = scalar_lea.sflag [#allocation4], 1
    %983 = vsyncpa %s982, 1
    %984 = vsyncpa [#allocation7], 1
    %s985 = scalar_lea.sflag [#allocation7], 1
    %986 = vsyncpa %s985, 1
    %987 = vsyncpa [#allocation5], 1
    %s988 = scalar_lea.sflag [#allocation5], 1
    %989 = vsyncpa %s988, 1

</llo_original>
